<compile_context>
chip_gen: v7x
topology: tpu7x:2x2x1
jax: 0.10.0
libtpu: 0.0.40
codegen_flags: <defaults>
</compile_context>

<pallas_src>
import math
import jax
import jax.numpy as jnp
from jax.experimental import pallas as pl
from jax.experimental.pallas import tpu as pltpu

MXU_DTYPE = jnp.float32   # flip to jnp.bfloat16 on v6e/v7x for 2x MXU throughput
LN_EPS = 1e-5
NEG_INF = -1e9


# --------------------------------------------------------------------------
# Tile-size helpers (always return a size that evenly divides the dim and
# respects the (8, 128) sublane/lane constraints)
# --------------------------------------------------------------------------

def _row_tile(m, target=256):
    if m <= target:
        return m
    t = (target // 8) * 8
    while t >= 8:
        if m % t == 0:
            return t
        t -= 8
    return m


def _lane_tile(n, target=512):
    if n <= target:
        return n
    t = (target // 128) * 128
    while t >= 128:
        if n % t == 0:
            return t
        t -= 128
    return n


# --------------------------------------------------------------------------
# Pallas kernels
# --------------------------------------------------------------------------

def linear(x, w, b, activation=None):
    """y = act(x @ w + b); tiled (M,N,K) matmul with f32 VMEM accumulator."""
    M, K = x.shape
    N = w.shape[1]
    tm, tn, tk = _row_tile(M, 256), _lane_tile(N, 256), _lane_tile(K, 512)
    b2 = b.reshape(1, N)

    def kernel(x_ref, w_ref, b_ref, o_ref, acc_ref):
        k = pl.program_id(2)

        @pl.when(k == 0)
        def _():
            acc_ref[...] = jnp.zeros_like(acc_ref)

        acc_ref[...] += jnp.dot(x_ref[...].astype(MXU_DTYPE),
                                w_ref[...].astype(MXU_DTYPE),
                                preferred_element_type=jnp.float32)

        @pl.when(k == pl.num_programs(2) - 1)
        def _():
            y = acc_ref[...] + b_ref[...]
            if activation == "relu":
                y = jnp.maximum(y, 0.0)
            o_ref[...] = y

    return pl.pallas_call(
        kernel,
        out_shape=jax.ShapeDtypeStruct((M, N), jnp.float32),
        grid=(M // tm, N // tn, K // tk),
        in_specs=[
            pl.BlockSpec((tm, tk), lambda i, j, k: (i, k)),
            pl.BlockSpec((tk, tn), lambda i, j, k: (k, j)),
            pl.BlockSpec((1, tn), lambda i, j, k: (0, j)),
        ],
        out_specs=pl.BlockSpec((tm, tn), lambda i, j, k: (i, j)),
        scratch_shapes=[pltpu.VMEM((tm, tn), jnp.float32)],
        compiler_params=pltpu.CompilerParams(
            dimension_semantics=("parallel", "parallel", "arbitrary")),
    )(x, w, b2)


def fused_mha(q, k, v, pad_add, causal, scale):
    """softmax(q k^T * scale + pad + causal) v for ALL (batch*head) in one call.

    q, k, v: [BH, T, dh] f32.  pad_add: [BH, 1, Tk] additive pad mask (0/-1e9).
    The full [BH, Tq, Tk] mask is expanded in-kernel (no broadcast-mask DMA),
    and no explicit transpose of K is materialized (dot_general contraction)."""
    BH, Tq, dh = q.shape
    Tk = k.shape[1]

    def kernel(q_ref, k_ref, v_ref, m_ref, o_ref):
        s = jnp.einsum('bqd,bkd->bqk', q_ref[...], k_ref[...],
                       preferred_element_type=jnp.float32) * scale
        s = s + m_ref[...]                       # [BH,1,Tk] broadcast over queries
        if causal:
            qi = jax.lax.broadcasted_iota(jnp.int32, s.shape, 1)
            ki = jax.lax.broadcasted_iota(jnp.int32, s.shape, 2)
            s = jnp.where(ki <= qi, s, NEG_INF)
        s = s - jnp.max(s, axis=-1, keepdims=True)
        p = jnp.exp(s)
        inv = pl.reciprocal(jnp.sum(p, axis=-1, keepdims=True), approx=True)
        o = jnp.einsum('bqk,bkd->bqd', p, v_ref[...],
                       preferred_element_type=jnp.float32)
        o_ref[...] = o * inv

    return pl.pallas_call(
        kernel,
        out_shape=jax.ShapeDtypeStruct((BH, Tq, dh), jnp.float32),
        grid=(1,),
        in_specs=[
            pl.BlockSpec((BH, Tq, dh), lambda i: (0, 0, 0)),
            pl.BlockSpec((BH, Tk, dh), lambda i: (0, 0, 0)),
            pl.BlockSpec((BH, Tk, dh), lambda i: (0, 0, 0)),
            pl.BlockSpec((BH, 1, Tk), lambda i: (0, 0, 0)),
        ],
        out_specs=pl.BlockSpec((BH, Tq, dh), lambda i: (0, 0, 0)),
    )(q, k, v, pad_add)


def proj_residual_ln(ctx, h, wo, bo, g, b):
    """LayerNorm(h + ctx @ wo + bo) fused in one kernel, tiled over rows."""
    M, D = h.shape
    tm = _row_tile(M, 256)

    def kernel(c_ref, h_ref, w_ref, bo_ref, g_ref, b_ref, o_ref):
        y = jnp.dot(c_ref[...].astype(MXU_DTYPE), w_ref[...].astype(MXU_DTYPE),
                    preferred_element_type=jnp.float32) + bo_ref[...]
        x = h_ref[...] + y
        mu = jnp.mean(x, axis=-1, keepdims=True)
        var = jnp.mean((x - mu) * (x - mu), axis=-1, keepdims=True)
        o_ref[...] = (x - mu) * jax.lax.rsqrt(var + LN_EPS) * g_ref[...] + b_ref[...]

    return pl.pallas_call(
        kernel,
        out_shape=jax.ShapeDtypeStruct((M, D), jnp.float32),
        grid=(M // tm,),
        in_specs=[
            pl.BlockSpec((tm, D), lambda i: (i, 0)),
            pl.BlockSpec((tm, D), lambda i: (i, 0)),
            pl.BlockSpec((D, D), lambda i: (0, 0)),
            pl.BlockSpec((1, D), lambda i: (0, 0)),
            pl.BlockSpec((1, D), lambda i: (0, 0)),
            pl.BlockSpec((1, D), lambda i: (0, 0)),
        ],
        out_specs=pl.BlockSpec((tm, D), lambda i: (i, 0)),
        compiler_params=pltpu.CompilerParams(dimension_semantics=("parallel",)),
    )(ctx, h, wo, bo.reshape(1, D), g.reshape(1, D), b.reshape(1, D))


def ffn_residual_ln(h, w1, b1, w2, b2, g, b):
    """LayerNorm(h + relu(h@w1+b1)@w2 + b2); [M,FFN] intermediate stays on-chip."""
    M, D = h.shape
    F = w1.shape[1]
    tm = _row_tile(M, 128)

    def kernel(h_ref, w1_ref, b1_ref, w2_ref, b2_ref, g_ref, b_ref, o_ref):
        hh = h_ref[...]
        f = jnp.maximum(
            jnp.dot(hh.astype(MXU_DTYPE), w1_ref[...].astype(MXU_DTYPE),
                    preferred_element_type=jnp.float32) + b1_ref[...], 0.0)
        y = jnp.dot(f.astype(MXU_DTYPE), w2_ref[...].astype(MXU_DTYPE),
                    preferred_element_type=jnp.float32) + b2_ref[...]
        x = hh + y
        mu = jnp.mean(x, axis=-1, keepdims=True)
        var = jnp.mean((x - mu) * (x - mu), axis=-1, keepdims=True)
        o_ref[...] = (x - mu) * jax.lax.rsqrt(var + LN_EPS) * g_ref[...] + b_ref[...]

    return pl.pallas_call(
        kernel,
        out_shape=jax.ShapeDtypeStruct((M, D), jnp.float32),
        grid=(M // tm,),
        in_specs=[
            pl.BlockSpec((tm, D), lambda i: (i, 0)),
            pl.BlockSpec((D, F), lambda i: (0, 0)),
            pl.BlockSpec((1, F), lambda i: (0, 0)),
            pl.BlockSpec((F, D), lambda i: (0, 0)),
            pl.BlockSpec((1, D), lambda i: (0, 0)),
            pl.BlockSpec((1, D), lambda i: (0, 0)),
            pl.BlockSpec((1, D), lambda i: (0, 0)),
        ],
        out_specs=pl.BlockSpec((tm, D), lambda i: (i, 0)),
        compiler_params=pltpu.CompilerParams(dimension_semantics=("parallel",)),
    )(h, w1, b1.reshape(1, F), w2, b2.reshape(1, D),
      g.reshape(1, D), b.reshape(1, D))


def pool_classify(h, w, b):
    """pooled = mean(h, axis=1); logits = pooled @ w + b.  h [B,T,D]."""
    B, T, D = h.shape
    N = w.shape[1]

    def kernel(h_ref, w_ref, b_ref, o_ref):
        pooled = jnp.mean(h_ref[...], axis=1)      # [B, D]
        o_ref[...] = jnp.dot(pooled.astype(MXU_DTYPE), w_ref[...].astype(MXU_DTYPE),
                             preferred_element_type=jnp.float32) + b_ref[...]

    return pl.pallas_call(
        kernel,
        out_shape=jax.ShapeDtypeStruct((B, N), jnp.float32),
        grid=(1,),
        in_specs=[
            pl.BlockSpec((B, T, D), lambda i: (0, 0, 0)),
            pl.BlockSpec((D, N), lambda i: (0, 0)),
            pl.BlockSpec((1, N), lambda i: (0, 0)),
        ],
        out_specs=pl.BlockSpec((B, N), lambda i: (0, 0)),
    )(h, w, b.reshape(1, N))


def cross_entropy_mean(logits, labels):
    """Mean token cross-entropy; tiled over rows AND vocab (online logsumexp)."""
    M, V = logits.shape
    tm = _row_tile(M, 256)
    tv = _lane_tile(V, 2048)
    labels2 = labels.reshape(M, 1).astype(jnp.int32)
    inv_m = 1.0 / M

    def kernel(lg_ref, lb_ref, loss_ref, m_sc, s_sc, g_sc):
        i = pl.program_id(0)
        j = pl.program_id(1)

        @pl.when(jnp.logical_and(i == 0, j == 0))
        def _():
            loss_ref[...] = jnp.zeros_like(loss_ref)

        @pl.when(j == 0)
        def _():
            m_sc[...] = jnp.full_like(m_sc, -jnp.inf)
            s_sc[...] = jnp.zeros_like(s_sc)
            g_sc[...] = jnp.zeros_like(g_sc)

        lg = lg_ref[...]
        m_new = jnp.maximum(m_sc[...], jnp.max(lg, axis=-1, keepdims=True))
        s_sc[...] = s_sc[...] * jnp.exp(m_sc[...] - m_new) + \
            jnp.sum(jnp.exp(lg - m_new), axis=-1, keepdims=True)
        m_sc[...] = m_new
        col = jax.lax.broadcasted_iota(jnp.int32, lg.shape, 1) + j * tv
        g_sc[...] += jnp.sum(jnp.where(col == lb_ref[...], lg, 0.0),
                             axis=-1, keepdims=True)

        @pl.when(j == pl.num_programs(1) - 1)
        def _():
            per_row = m_sc[...] + jnp.log(s_sc[...]) - g_sc[...]
            loss_ref[...] += jnp.sum(per_row) * inv_m

    out = pl.pallas_call(
        kernel,
        out_shape=jax.ShapeDtypeStruct((1, 1), jnp.float32),
        grid=(M // tm, V // tv),
        in_specs=[
            pl.BlockSpec((tm, tv), lambda i, j: (i, j)),
            pl.BlockSpec((tm, 1), lambda i, j: (i, 0)),
        ],
        out_specs=pl.BlockSpec((1, 1), lambda i, j: (0, 0)),
        scratch_shapes=[pltpu.VMEM((tm, 1), jnp.float32)] * 3,
        compiler_params=pltpu.CompilerParams(
            dimension_semantics=("arbitrary", "arbitrary")),
    )(logits, labels2)
    return out[0, 0]


# --------------------------------------------------------------------------
# Model glue (plain JAX around the kernels)
# --------------------------------------------------------------------------

def _split_heads(x2d, B, T, H, dh):
    return x2d.reshape(B, T, H, dh).transpose(0, 2, 1, 3).reshape(B * H, T, dh)


def _merge_heads(x, B, T, H, dh):
    return x.reshape(B, H, T, dh).transpose(0, 2, 1, 3).reshape(B * T, H * dh)


def mha_self(x, pad_bh, causal, p, H):
    """Self-attention context (pre output-projection), fused QKV projection."""
    B, T, D = x.shape
    dh = D // H
    qkv = linear(x.reshape(B * T, D), p["wqkv"], p["bqkv"])   # [B*T, 3D]
    q = _split_heads(qkv[:, :D], B, T, H, dh)
    k = _split_heads(qkv[:, D:2 * D], B, T, H, dh)
    v = _split_heads(qkv[:, 2 * D:], B, T, H, dh)
    o = fused_mha(q, k, v, pad_bh, causal, 1.0 / math.sqrt(dh))
    return _merge_heads(o, B, T, H, dh)                       # [B*T, D]


def mha_cross(x_q, x_kv, pad_bh, p, H):
    """Cross-attention context (pre output-projection), fused KV projection."""
    B, Tq, D = x_q.shape
    Tk = x_kv.shape[1]
    dh = D // H
    q2 = linear(x_q.reshape(B * Tq, D), p["wq"], p["bq"])     # [B*Tq, D]
    kv = linear(x_kv.reshape(B * Tk, D), p["wkv"], p["bkv"])  # [B*Tk, 2D]
    q = _split_heads(q2, B, Tq, H, dh)
    k = _split_heads(kv[:, :D], B, Tk, H, dh)
    v = _split_heads(kv[:, D:], B, Tk, H, dh)
    o = fused_mha(q, k, v, pad_bh, False, 1.0 / math.sqrt(dh))
    return _merge_heads(o, B, Tq, H, dh)                      # [B*Tq, D]


def encoder_layer(h, enc_pad_bh, p, H):
    B, T, D = h.shape
    h2 = h.reshape(B * T, D)
    a = mha_self(h, enc_pad_bh, False, p["self"], H)
    h2 = proj_residual_ln(a, h2, p["self"]["wo"], p["self"]["bo"],
                          p["ln1_g"], p["ln1_b"])
    h2 = ffn_residual_ln(h2, p["ffn_w1"], p["ffn_b1"], p["ffn_w2"], p["ffn_b2"],
                         p["ln2_g"], p["ln2_b"])
    return h2.reshape(B, T, D)


def decoder_layer(h, enc_h, dec_pad_bh, cross_pad_bh, p, H):
    B, T, D = h.shape
    h2 = h.reshape(B * T, D)
    a = mha_self(h, dec_pad_bh, True, p["self"], H)
    h2 = proj_residual_ln(a, h2, p["self"]["wo"], p["self"]["bo"],
                          p["ln1_g"], p["ln1_b"])
    c = mha_cross(h2.reshape(B, T, D), enc_h, cross_pad_bh, p["cross"], H)
    h2 = proj_residual_ln(c, h2, p["cross"]["wo"], p["cross"]["bo"],
                          p["ln2_g"], p["ln2_b"])
    h2 = ffn_residual_ln(h2, p["ffn_w1"], p["ffn_b1"], p["ffn_w2"], p["ffn_b2"],
                         p["ln3_g"], p["ln3_b"])
    return h2.reshape(B, T, D)


def tlp_seq2seq_forward(params, input_ids, attention_mask, labels, H):
    B, S = input_ids.shape
    T = labels.shape[1]
    D = params["embed"].shape[1]
    V = params["lm_w"].shape[1]

    # Embedding lookup + learned positions (glue; gather has no tiled hot path).
    scale = math.sqrt(D)
    enc_h = jnp.take(params["embed"], input_ids, axis=0) * scale \
        + params["pos"][:S][None, :, :]

    # Decoder input ids = labels shifted right with BOS=1 (HF seq2seq convention).
    bos = jnp.ones((B, 1), dtype=labels.dtype)
    dec_in = jnp.concatenate([bos, labels[:, :-1]], axis=1)
    dec_h = jnp.take(params["embed"], dec_in, axis=0) * scale \
        + params["pos"][:T][None, :, :]

    # Tiny per-(batch,head) additive pad vectors; the full [BH,Tq,Tk] masks are
    # built inside the attention kernel (no broadcast-mask HBM traffic).
    pad_add = (1.0 - attention_mask.astype(jnp.float32)) * NEG_INF      # [B, S]
    enc_pad = jnp.repeat(pad_add, H, axis=0).reshape(B * H, 1, S)
    dec_pad = jnp.zeros((B * H, 1, T), jnp.float32)   # causal mask added in-kernel

    for lp in params["enc_layers"]:
        enc_h = encoder_layer(enc_h, enc_pad, lp, H)
    for lp in params["dec_layers"]:
        dec_h = decoder_layer(dec_h, enc_h, dec_pad, enc_pad, lp, H)

    # LM head -> outputs.logits (tiled matmul).
    logits2d = linear(dec_h.reshape(B * T, D), params["lm_w"], params["lm_b"])
    logits = logits2d.reshape(B, T, V)

    # loss_nmt (mean token cross-entropy of logits vs labels).
    loss_nmt = cross_entropy_mean(logits2d, labels.reshape(B * T))

    # pooled = decoder_hidden_states[-1].mean(dim=1); lang_logits = Linear(pooled).
    lang_logits = pool_classify(dec_h, params["cls_w"], params["cls_b"])

    return logits, lang_logits, loss_nmt


# --------------------------------------------------------------------------
# Deterministic parameter init
# --------------------------------------------------------------------------

def init_params(key, V, D, H, FFN, n_enc, n_dec, n_langs, max_len):
    keys = iter(jax.random.split(key, 256))

    def dense(din, dout):
        return 0.02 * jax.random.normal(next(keys), (din, dout), jnp.float32)

    def self_attn():
        return {
            "wqkv": dense(D, 3 * D), "bqkv": jnp.zeros((3 * D,), jnp.float32),
            "wo": dense(D, D), "bo": jnp.zeros((D,), jnp.float32),
        }

    def cross_attn():
        return {
            "wq": dense(D, D), "bq": jnp.zeros((D,), jnp.float32),
            "wkv": dense(D, 2 * D), "bkv": jnp.zeros((2 * D,), jnp.float32),
            "wo": dense(D, D), "bo": jnp.zeros((D,), jnp.float32),
        }

    def enc_layer():
        return {
            "self": self_attn(),
            "ln1_g": jnp.ones((D,), jnp.float32), "ln1_b": jnp.zeros((D,), jnp.float32),
            "ffn_w1": dense(D, FFN), "ffn_b1": jnp.zeros((FFN,), jnp.float32),
            "ffn_w2": dense(FFN, D), "ffn_b2": jnp.zeros((D,), jnp.float32),
            "ln2_g": jnp.ones((D,), jnp.float32), "ln2_b": jnp.zeros((D,), jnp.float32),
        }

    def dec_layer():
        p = enc_layer()
        p["cross"] = cross_attn()
        p["ln3_g"] = jnp.ones((D,), jnp.float32)
        p["ln3_b"] = jnp.zeros((D,), jnp.float32)
        return p

    return {
        "embed": 0.02 * jax.random.normal(next(keys), (V, D), jnp.float32),
        "pos": 0.02 * jax.random.normal(next(keys), (max_len, D), jnp.float32),
        "enc_layers": [enc_layer() for _ in range(n_enc)],
        "dec_layers": [dec_layer() for _ in range(n_dec)],
        "lm_w": dense(D, V), "lm_b": jnp.zeros((V,), jnp.float32),
        "cls_w": dense(D, n_langs), "cls_b": jnp.zeros((n_langs,), jnp.float32),
    }


# --------------------------------------------------------------------------

if __name__ == "__main__":
    B, S, T = 2, 8, 8
    V, D, H, FFN = 64, 32, 4, 128
    n_langs, max_len = 6, 16

    key = jax.random.PRNGKey(0)
    k_p, k_in, k_lab = jax.random.split(key, 3)

    params = init_params(k_p, V, D, H, FFN, n_enc=2, n_dec=2,
                         n_langs=n_langs, max_len=max_len)

    input_ids = jax.random.randint(k_in, (B, S), 2, V).astype(jnp.int32)
    attention_mask = jnp.ones((B, S), jnp.int32).at[1, S - 2:].set(0)  # some padding
    labels = jax.random.randint(k_lab, (B, T), 2, V).astype(jnp.int32)

    logits, lang_logits, loss_nmt = tlp_seq2seq_forward(
        params, input_ids, attention_mask, labels, H)

    jax.block_until_ready((logits, lang_logits, loss_nmt))
    assert logits.shape == (B, T, V)
    assert lang_logits.shape == (B, n_langs)
    assert loss_nmt.shape == ()
    # TODO(synk): self.tlp_encoder (BertEncoder) is built in __init__ but never
    # used in forward(), so it is deliberately not implemented.
    print("KERNEL_OK")
</pallas_src>

<mosaic_0001>
module attributes {stable_mosaic.version = 11 : i64} {
  func.func @kernel(%arg0: i32, %arg1: i32, %arg2: i32, %arg3: memref<16x32xf32, #tpu.memory_space<vmem>>, %arg4: memref<32x96xf32, #tpu.memory_space<vmem>>, %arg5: memref<1x96xf32, #tpu.memory_space<vmem>>, %arg6: memref<16x96xf32, #tpu.memory_space<vmem>>, %arg7: memref<16x96xf32, #tpu.memory_space<vmem>>) attributes {dimension_semantics = [#tpu.dimension_semantics<parallel>, #tpu.dimension_semantics<parallel>, #tpu.dimension_semantics<arbitrary>], iteration_bounds = array<i64: 1, 1, 1>, scalar_prefetch = 0 : i64, scratch_operands = 1 : i64, tpu.core_type = #tpu.core_type<tc>, window_params = [{transform_indices = @transform_0, window_bounds = array<i64: 16, 32>}, {transform_indices = @transform_1, window_bounds = array<i64: 32, 96>}, {transform_indices = @transform_2, window_bounds = array<i64: 1, 96>}, {transform_indices = @transform_3, window_bounds = array<i64: 16, 96>}]} {
    %c0_i32 = arith.constant 0 : i32
    %0 = arith.cmpi eq, %arg2, %c0_i32 : i32
    %1 = arith.extui %0 : i1 to i32
    %c0_i32_0 = arith.constant 0 : i32
    %2 = arith.cmpi ne, %1, %c0_i32_0 : i32
    scf.if %2 {
      %cst_10 = arith.constant 0.000000e+00 : f32
      %12 = vector.broadcast %cst_10 : f32 to vector<16x96xf32>
      %c0_11 = arith.constant 0 : index
      %c0_12 = arith.constant 0 : index
      %13 = vector.load %arg7[%c0_11, %c0_12] : memref<16x96xf32, #tpu.memory_space<vmem>>, vector<16x96xf32>
      tpu.vector_store %arg7[%c0_11, %c0_12], %12 {strides = array<i32>} : memref<16x96xf32, #tpu.memory_space<vmem>>, vector<16x96xf32>,
    } else {
    }
    %c0 = arith.constant 0 : index
    %c0_1 = arith.constant 0 : index
    %3 = vector.load %arg7[%c0, %c0_1] : memref<16x96xf32, #tpu.memory_space<vmem>>, vector<16x96xf32>
    %c0_2 = arith.constant 0 : index
    %c0_3 = arith.constant 0 : index
    %4 = vector.load %arg3[%c0_2, %c0_3] : memref<16x32xf32, #tpu.memory_space<vmem>>, vector<16x32xf32>
    %c0_4 = arith.constant 0 : index
    %c0_5 = arith.constant 0 : index
    %5 = vector.load %arg4[%c0_4, %c0_5] : memref<32x96xf32, #tpu.memory_space<vmem>>, vector<32x96xf32>
    %cst = arith.constant dense<0.000000e+00> : vector<16x96xf32>
    %6 = tpu.matmul %4, %5, %cst {dimension_numbers = #tpu.dot_dimension_numbers<[1], [0], [0], [1], [0, 0, 1, 1], [], []>} : vector<16x32xf32>, vector<32x96xf32>, vector<16x96xf32> -> vector<16x96xf32>
    %7 = arith.addf %3, %6 : vector<16x96xf32>
    %c0_6 = arith.constant 0 : index
    %c0_7 = arith.constant 0 : index
    %8 = vector.load %arg7[%c0_6, %c0_7] : memref<16x96xf32, #tpu.memory_space<vmem>>, vector<16x96xf32>
    tpu.vector_store %arg7[%c0_6, %c0_7], %7 {strides = array<i32>} : memref<16x96xf32, #tpu.memory_space<vmem>>, vector<16x96xf32>,
    %c0_i32_8 = arith.constant 0 : i32
    %9 = arith.cmpi eq, %arg2, %c0_i32_8 : i32
    %10 = arith.extui %9 : i1 to i32
    %c0_i32_9 = arith.constant 0 : i32
    %11 = arith.cmpi ne, %10, %c0_i32_9 : i32
    scf.if %11 {
      %c0_10 = arith.constant 0 : index
      %c0_11 = arith.constant 0 : index
      %12 = vector.load %arg7[%c0_10, %c0_11] : memref<16x96xf32, #tpu.memory_space<vmem>>, vector<16x96xf32>
      %c0_12 = arith.constant 0 : index
      %c0_13 = arith.constant 0 : index
      %13 = vector.load %arg5[%c0_12, %c0_13] : memref<1x96xf32, #tpu.memory_space<vmem>>, vector<1x96xf32>
      %14 = vector.broadcast %13 : vector<1x96xf32> to vector<16x96xf32>
      %15 = arith.addf %12, %14 : vector<16x96xf32>
      %c0_14 = arith.constant 0 : index
      %c0_15 = arith.constant 0 : index
      %16 = vector.load %arg6[%c0_14, %c0_15] : memref<16x96xf32, #tpu.memory_space<vmem>>, vector<16x96xf32>
      tpu.vector_store %arg6[%c0_14, %c0_15], %15 {strides = array<i32>} : memref<16x96xf32, #tpu.memory_space<vmem>>, vector<16x96xf32>,
    } else {
    }
    return
  }
  func.func @transform_0(%arg0: i32, %arg1: i32, %arg2: i32) -> (i32, i32) {
    %c0_i32 = arith.constant 0 : i32
    return %arg0, %arg2 : i32, i32
  }
  func.func @transform_1(%arg0: i32, %arg1: i32, %arg2: i32) -> (i32, i32) {
    %c0_i32 = arith.constant 0 : i32
    return %arg2, %arg1 : i32, i32
  }
  func.func @transform_2(%arg0: i32, %arg1: i32, %arg2: i32) -> (i32, i32) {
    %c0_i32 = arith.constant 0 : i32
    %c0_i32_0 = arith.constant 0 : i32
    return %c0_i32, %arg1 : i32, i32
  }
  func.func @transform_3(%arg0: i32, %arg1: i32, %arg2: i32) -> (i32, i32) {
    %c0_i32 = arith.constant 0 : i32
    return %arg0, %arg1 : i32, i32
  }
}

</mosaic_0001>

<llo_original>
// kernel: tpu_custom_call.1
$region0: #{tpu_custom_call.1}
  #allocation0 [shape = 'u32[]', space=smem, size = 0x4, offset = 0x4, fixed_abs, tag = 'smem constant byte address 0x4 - core index']
  #allocation1 [shape = 'u32[144,128]{1,0:T(1,128)}', space=vmem, size = 0x12000, scoped, tag = 'internal scratch']
  #allocation2 [shape = 'f32[16,96]{1,0:T(8,128)}', space=vmem, size = 0x2000, scoped, tag = 'scratch operand']
  %s0 = inlined_call_operand.hbm [shape: f32[16,32], index: 0, kind: input, shape index: {}]
  %s1 = inlined_call_operand.hbm [shape: f32[32,96], index: 1, kind: input, shape index: {}]
  %s2 = inlined_call_operand.vmem [shape: f32[1,96], index: 2, kind: input, shape index: {}]
  %s3 = inlined_call_operand.hbm [shape: f32[16,96], index: 3, kind: output, shape index: {}]
  %s4 = sld [smem:[#allocation0]]
  $region38: #{tpu_custom_call.1} parent=0
    _
  %s6 = ssub.s32 1, %s4
  %s7 = scalar_select 0, %s6, %s4
  $region1: #{tpu_custom_call.1} parent=0
    #allocation3 [shape = 'u8[8192]{0}', space=vmem, size = 0x2000, scoped, tag = 'input window, operand 0, single buffered']
    #allocation4 [shape = 's32[1]{0}', space=sflag, size = 0x4, scoped, tag = 'scoped memory for tpu_custom_call.1']
    #allocation5 [shape = 's32[1]{0}', space=sflag, size = 0x4, scoped, tag = 'scoped memory for tpu_custom_call.1']
    #allocation6 [shape = 'u8[16384]{0}', space=vmem, size = 0x4000, scoped, tag = 'input window, operand 1, single buffered']
    #allocation7 [shape = 's32[1]{0}', space=sflag, size = 0x4, scoped, tag = 'scoped memory for tpu_custom_call.1']
    #allocation8 [shape = 'u8[8192]{0}', space=vmem, size = 0x2000, scoped, tag = 'output window, operand 0, single buffered']
    %8 = vsyncpa [#allocation4], 0
    %9 = vsyncpa [#allocation7], 0
    %10 = vsyncpa [#allocation5], 0
    // Predicated region
    $region2: #{tpu_custom_call.1} parent=1 // pred_check
      _
    $region3: #{tpu_custom_call.1} parent=1 // pred_check_branch
      %12 = sbr.rel (0) target = $region5
    $region4: #{tpu_custom_call.1} parent=1 // pred_region
      %s14 = ssub.s32 256, 256
      %15 = vsyncadd [#allocation4], %s14
      %s16 = sshll.u32 [#allocation3], 4
      %s17 = int_to_ptr.vmem [resolvable:$true] %s16
      %22 = dma.hbm_to_vmem [thread:$0]  %s0, 256, %s17, [#allocation4], 128, 128, 8
    $region5: #{tpu_custom_call.1} parent=1 // pred_fallthru
      _
    // Predicated region
    $region6: #{tpu_custom_call.1} parent=1 // pred_check
      _
    $region7: #{tpu_custom_call.1} parent=1 // pred_check_branch
      %24 = sbr.rel (0) target = $region9
    $region8: #{tpu_custom_call.1} parent=1 // pred_region
      %s26 = ssub.s32 512, 512
      %27 = vsyncadd [#allocation7], %s26
      %s28 = sshll.u32 [#allocation6], 4
      %s29 = int_to_ptr.vmem [resolvable:$true] %s28
      %34 = dma.hbm_to_vmem [thread:$0]  %s1, 512, %s29, [#allocation7], 128, 128, 8
    $region9: #{tpu_custom_call.1} parent=1 // pred_fallthru
      _
    // Predicated region
    $region10: #{tpu_custom_call.1} parent=1 // pred_check
      _
    $region11: #{tpu_custom_call.1} parent=1 // pred_check_branch
      %36 = sbr.rel (0) target = $region13
    $region12: #{tpu_custom_call.1} parent=1 // pred_region
      _
    $region13: #{tpu_custom_call.1} parent=1 // pred_fallthru
      _
    // Predicated region
    $region14: #{tpu_custom_call.1} parent=1 // pred_check
      _
    $region15: #{tpu_custom_call.1} parent=1 // pred_check_branch
      %38 = sbr.rel (0) target = $region17
    $region16: #{tpu_custom_call.1} parent=1 // pred_region
      %39 = dma.done [#allocation4], 256
    $region17: #{tpu_custom_call.1} parent=1 // pred_fallthru
      _
    // Predicated region
    $region18: #{tpu_custom_call.1} parent=1 // pred_check
      _
    $region19: #{tpu_custom_call.1} parent=1 // pred_check_branch
      %41 = sbr.rel (0) target = $region21
    $region20: #{tpu_custom_call.1} parent=1 // pred_region
      %42 = dma.done [#allocation7], 512
    $region21: #{tpu_custom_call.1} parent=1 // pred_fallthru
      _
    %p43 = scmp.eq.s32.totalorder 0, 0
    // Predicated region
    $region22: #{tpu_custom_call.1} parent=1 // pred_check
      %p44 = pneg %p43
    $region23: #{tpu_custom_call.1} parent=1 // pred_check_branch
      %46 = sbr.rel (%p44) target = $region25
    $region24: #{tpu_custom_call.1} parent=1 // pred_region
      %vm47 = vcmask 785408
      %48 = vst.msk [vmem:[#allocation2] sm:$0xff] %vm47, 0.0
      %49 = vst.msk [vmem:[#allocation2 + $0x8] sm:$0xff] %vm47, 0.0
    $region25: #{tpu_custom_call.1} parent=1 // pred_fallthru
      _
    %v50 = vld [vmem:[#allocation2] sm:$0xff]
    %v51 = vld [vmem:[#allocation2 + $0x8] sm:$0xff]
    %v52 = vld [vmem:[#allocation3] sm:$0xff]
    %v53 = vld [vmem:[#allocation3 + $0x8] sm:$0xff]
    %v54 = vld [vmem:[#allocation6] sm:$0xff]
    %v55 = vld [vmem:[#allocation6 + $0x8] sm:$0xff]
    %v56 = vld [vmem:[#allocation6 + $0x10] sm:$0xff]
    %v57 = vld [vmem:[#allocation6 + $0x18] sm:$0xff]
    %vm58 = vcmask 261120
    %v60 = vsel %vm58, %v52, 0
    %v63 = vsel %vm58, %v53, 0
    %65 = vmatprep.subr.mxu0 0.0
    %66 = vmatpush1.msra.mxu0 %v54
    %67 = vmatprep.subr.mxu0 0.0
    %68 = vmatpush1.msra.mxu0 %v55
    %69 = vmatprep.subr.mxu0 0.0
    %70 = vmatpush1.msra.mxu0 %v56
    %71 = vmatprep.subr.mxu0 0.0
    %72 = vmatpush1.msra.mxu0 %v57
    %73 = vmatprep.subr.mxu0 0.0
    %74 = vmatpush1.msra.mxu0 0.0
    %75 = vmatprep.subr.mxu0 0.0
    %76 = vmatpush1.msra.mxu0 0.0
    %77 = vmatprep.subr.mxu0 0.0
    %78 = vmatpush1.msra.mxu0 0.0
    %79 = vmatprep.subr.mxu0 0.0
    %80 = vmatpush1.msra.mxu0 0.0
    %81 = vmatprep.subr.mxu0 0.0
    %82 = vmatpush1.msra.mxu0 0.0
    %83 = vmatprep.subr.mxu0 0.0
    %84 = vmatpush1.msra.mxu0 0.0
    %85 = vmatprep.subr.mxu0 0.0
    %86 = vmatpush1.msra.mxu0 0.0
    %87 = vmatprep.subr.mxu0 0.0
    %88 = vmatpush1.msra.mxu0 0.0
    %89 = vmatprep.subr.mxu0 0.0
    %90 = vmatpush1.msra.mxu0 0.0
    %91 = vmatprep.subr.mxu0 0.0
    %92 = vmatpush1.msra.mxu0 0.0
    %93 = vmatprep.subr.mxu0 0.0
    %94 = vmatpush1.msra.mxu0 0.0
    %95 = vmatprep.subr.mxu0 0.0
    %96 = vmatpush1.msra.mxu0 0.0
    %97 = vmatprep.subr.mxu0 0.0
    %98 = vmatpush1.msra.mxu0 0.0
    %99 = vmatprep.subr.mxu0 0.0
    %100 = vmatpush1.msra.mxu0 0.0
    %101 = vmatprep.subr.mxu0 0.0
    %102 = vmatpush1.msra.mxu0 0.0
    %103 = vmatprep.subr.mxu0 0.0
    %104 = vmatpush1.msra.mxu0 0.0
    %105 = vmatprep.subr.mxu0 0.0
    %106 = vmatpush1.msra.mxu0 0.0
    %107 = vmatprep.subr.mxu0 0.0
    %108 = vmatpush1.msra.mxu0 0.0
    %109 = vmatprep.subr.mxu0 0.0
    %110 = vmatpush1.msra.mxu0 0.0
    %111 = vmatprep.subr.mxu0 0.0
    %112 = vmatpush1.msra.mxu0 0.0
    %113 = vmatprep.subr.mxu0 0.0
    %114 = vmatpush1.msra.mxu0 0.0
    %115 = vmatprep.subr.mxu0 0.0
    %116 = vmatpush1.msra.mxu0 0.0
    %117 = vmatprep.subr.mxu0 0.0
    %118 = vmatpush1.msra.mxu0 0.0
    %119 = vmatprep.subr.mxu0 0.0
    %120 = vmatpush1.msra.mxu0 0.0
    %121 = vmatprep.subr.mxu0 0.0
    %122 = vmatpush1.msra.mxu0 0.0
    %123 = vmatprep.subr.mxu0 0.0
    %124 = vmatpush1.msra.mxu0 0.0
    %125 = vmatprep.subr.mxu0 0.0
    %126 = vmatpush1.msra.mxu0 0.0
    %127 = vmatprep.subr.mxu0 0.0
    %128 = vmatpush1.msra.mxu0 0.0
    %129 = vmatprep.mubr.f32.mxu0 0.0
    %130 = vmatmul.mubr.f32.gmra.mrb[0].mxu0 %v60
    %v131 = vpop.f32.mrb[0].mxu0
    %v132 = vadd.f32 0.0, %v131
    %v133 = vpop.f32.mrb[0].mxu0
    %134 = vmatprep.mubr.f32.mxu0 0.0
    %135 = vmatmul.mubr.f32.gmra.mrb[0].mxu0 %v63
    %v136 = vpop.f32.mrb[0].mxu0
    %v137 = vadd.f32 0.0, %v136
    %v138 = vpop.f32.mrb[0].mxu0
    %139 = vdwg.mxu0
    %v140 = vadd.f32 %v50, %v132
    %v141 = vadd.f32 %v51, %v137
    %vm142 = vcmask 785408
    %143 = vst.msk [vmem:[#allocation2] sm:$0xff] %vm142, %v140
    %144 = vst.msk [vmem:[#allocation2 + $0x8] sm:$0xff] %vm142, %v141
    // Predicated region
    $region26: #{tpu_custom_call.1} parent=1 // pred_check
      %p145 = pneg %p43
    $region27: #{tpu_custom_call.1} parent=1 // pred_check_branch
      %147 = sbr.rel (%p145) target = $region29
    $region28: #{tpu_custom_call.1} parent=1 // pred_region
      %v148 = vld [vmem:[#allocation2] sm:$0xff]
      %v149 = vld [vmem:[#allocation2 + $0x8] sm:$0xff]
      %v150 = vld [vmem:[%s2] sm:$0x1]
      %v152 = vlaneseq
      %v153 = vshrl.u32 %v152, 7
      %v154 = vsub.s32 0, %v153
      %v155 = vrot.slane %v150, %v154
      %v157 = vadd.f32 %v148, %v155
      %v158 = vadd.f32 %v149, %v155
      %159 = vst.msk [vmem:[#allocation8] sm:$0xff] %vm142, %v157
      %160 = vst.msk [vmem:[#allocation8 + $0x8] sm:$0xff] %vm142, %v158
    $region29: #{tpu_custom_call.1} parent=1 // pred_fallthru
      _
    // Predicated region
    $region30: #{tpu_custom_call.1} parent=1 // pred_check
      _
    $region31: #{tpu_custom_call.1} parent=1 // pred_check_branch
      %162 = sbr.rel (0) target = $region33
    $region32: #{tpu_custom_call.1} parent=1 // pred_region
      %s164 = ssub.s32 256, 256
      %165 = vsyncadd [#allocation5], %s164
      %s166 = sshll.u32 [#allocation8], 4
      %s167 = int_to_ptr.vmem [resolvable:$true] %s166
      %172 = dma.vmem_to_hbm [thread:$0]  %s167, 256, %s3, [#allocation5], 128, 128, 8
    $region33: #{tpu_custom_call.1} parent=1 // pred_fallthru
      _
    // Predicated region
    $region34: #{tpu_custom_call.1} parent=1 // pred_check
      _
    $region35: #{tpu_custom_call.1} parent=1 // pred_check_branch
      %174 = sbr.rel (0) target = $region37
    $region36: #{tpu_custom_call.1} parent=1 // pred_region
      %175 = dma.done [#allocation5], 256
    $region37: #{tpu_custom_call.1} parent=1 // pred_fallthru
      _
    %176 = vsyncpa [#allocation4], 1
    %177 = vsyncpa [#allocation7], 1
    %178 = vsyncpa [#allocation5], 1

</llo_original>
